<compile_context>
chip_gen: v5e
topology: v5e:2x2
jax: 0.10.0
libtpu: 0.0.40
codegen_flags: <defaults>
</compile_context>

<pallas_src>
import functools

import jax
import jax.numpy as jnp
from jax.experimental import pallas as pl
from jax.experimental.pallas import tpu as pltpu

_LANES = 128
_ACC_SUBLANES = 8                 # partial-sum output is always an (8, 128) f32 vreg
_MAX_BLOCK_ROWS = 8192            # 4 MiB of f32 per streamed input block
_MIN_TILE_ROWS = 512
_TARGET_TILES = 4                 # >= 2 tiles per TensorCore (v7x megacore)
_VMEM_CAP_BYTES = 56 << 20        # never request more than this (v7x physical = 64 MiB)
_MiB = 1 << 20


def _cdiv(a, b):
    return -(-a // b)


def _round_up(a, m):
    return _cdiv(a, m) * m


def _sub_for(dtype):
    """Dtype-specific sublane packing multiple: 8 f32, 16 bf16/f16, 32 int8/fp8."""
    return max(8, 32 // jnp.dtype(dtype).itemsize)


# --------------------------------------------------------------------------- #
# Kernel bodies
# --------------------------------------------------------------------------- #
def _reduce_pair(step, n_steps, a_ref, b_ref, abs_ref, sq_ref, *, total_rows, mask_mode):
    """Reduce one (tile_rows, 128) block pair to (8, 128) partial |d| and d^2 sums."""
    tile_rows = a_ref.shape[0]
    d = a_ref[...].astype(jnp.float32) - b_ref[...].astype(jnp.float32)

    def emit(dv):
        d3 = dv.reshape(tile_rows // _ACC_SUBLANES, _ACC_SUBLANES, _LANES)
        abs_ref[0] = jnp.sum(jnp.abs(d3), axis=0)
        sq_ref[0] = jnp.sum(d3 * d3, axis=0)

    def emit_masked():
        # Rows past the end of the slab hold unspecified VMEM; select them to 0.
        row = jax.lax.broadcasted_iota(jnp.int32, d.shape, 0)
        emit(jnp.where(step * tile_rows + row < total_rows, d, 0.0))

    if mask_mode == "none":
        emit(d)
    elif mask_mode == "always":
        emit_masked()
    else:  # "last": only the final grid step can read past the end of the slab
        @pl.when(step == n_steps - 1)
        def _():
            emit_masked()

        @pl.when(step != n_steps - 1)
        def _():
            emit(d)


def _single_pair_kernel(a_ref, b_ref, abs_ref, sq_ref, *, total_rows, mask_mode):
    i = pl.program_id(0)
    n = pl.num_programs(0)
    _reduce_pair(i, n, a_ref, b_ref, abs_ref, sq_ref,
                 total_rows=total_rows, mask_mode=mask_mode)


def _fused_pairs_kernel(xa_ref, xb_ref, sa_ref, sb_ref,
                        abs_x_ref, sq_x_ref, abs_s_ref, sq_s_ref,
                        *, rows_x, rows_s, mode_x, mode_s):
    i = pl.program_id(0)
    n = pl.num_programs(0)
    _reduce_pair(i, n, xa_ref, xb_ref, abs_x_ref, sq_x_ref,
                 total_rows=rows_x, mask_mode=mode_x)
    _reduce_pair(i, n, sa_ref, sb_ref, abs_s_ref, sq_s_ref,
                 total_rows=rows_s, mask_mode=mode_s)


# --------------------------------------------------------------------------- #
# Tiling plan / call wrappers
# --------------------------------------------------------------------------- #
def _plan_tiles(rows, sub, cap_rows, grid=None):
    """Pick tile_rows (multiple of `sub`, <= cap, aiming for >= _TARGET_TILES)."""
    cap = max(sub, (min(cap_rows, _MAX_BLOCK_ROWS) // sub) * sub)
    floor_rows = max(sub, (rows // sub) * sub)          # never exceed the slab
    if grid is None:
        want = max(_MIN_TILE_ROWS, _cdiv(rows, _TARGET_TILES))
    else:
        want = _cdiv(rows, grid)
    want = _round_up(want, sub)
    tile = min(cap, floor_rows, want)
    return tile, _cdiv(rows, tile)


def _mask_mode(rows, tile, n_blocks, grid):
    if n_blocks < grid:
        return "always"        # block index is clamped; off-range steps mask to 0
    return "none" if rows % tile == 0 else "last"


def _block_index_map(n_blocks, grid):
    if n_blocks == grid:
        return lambda i: (i, 0)
    last = n_blocks - 1
    return lambda i: (jnp.minimum(i, last), 0)


def _out_spec():
    return pl.BlockSpec((1, _ACC_SUBLANES, _LANES), lambda i: (i, 0, 0))


def _out_shape(grid):
    return jax.ShapeDtypeStruct((grid, _ACC_SUBLANES, _LANES), jnp.float32)


def _vmem_limit(in_block_bytes, f32_rows):
    # double-buffered input pipeline + in-kernel f32 temporaries + margin
    need = 2 * in_block_bytes + 4 * f32_rows * _LANES * 4 + 8 * _MiB
    return int(min(_VMEM_CAP_BYTES, need))


def _lane_view(a):
    # Contiguous reshape = bitcast; dtype stays native, cast to f32 in-kernel.
    return jnp.reshape(a, (a.size // _LANES, _LANES))


def _pallas_eligible(a, b):
    n = a.size
    if n == 0 or n != b.size or n % _LANES != 0:
        return False
    return (n // _LANES) >= max(_sub_for(a.dtype), _sub_for(b.dtype))


def _jnp_pair_sums(a, b):
    d = jnp.ravel(a).astype(jnp.float32) - jnp.ravel(b).astype(jnp.float32)
    return jnp.sum(jnp.abs(d)), jnp.sum(d * d)


def _single_pair_sums(a, b):
    rows = a.size // _LANES
    sub = max(_sub_for(a.dtype), _sub_for(b.dtype))
    tile, grid = _plan_tiles(rows, sub, _MAX_BLOCK_ROWS)
    mode = _mask_mode(rows, tile, grid, grid)
    kernel = functools.partial(_single_pair_kernel, total_rows=rows, mask_mode=mode)
    in_block_bytes = tile * _LANES * (a.dtype.itemsize + b.dtype.itemsize)
    abs_p, sq_p = pl.pallas_call(
        kernel,
        out_shape=(_out_shape(grid), _out_shape(grid)),
        grid=(grid,),
        in_specs=[pl.BlockSpec((tile, _LANES), lambda i: (i, 0)),
                  pl.BlockSpec((tile, _LANES), lambda i: (i, 0))],
        out_specs=(_out_spec(), _out_spec()),
        compiler_params=pltpu.CompilerParams(
            dimension_semantics=("parallel",),
            vmem_limit_bytes=_vmem_limit(in_block_bytes, tile)),
    )(_lane_view(a), _lane_view(b))
    return jnp.sum(abs_p), jnp.sum(sq_p)


def _fused_pair_sums(xa, xb, sa, sb):
    """One launch reducing both pairs; returns (sum|xa-xb|, sum (xa-xb)^2, sum|sa-sb|)."""
    rows_x = xa.size // _LANES
    rows_s = sa.size // _LANES
    sub_x = max(_sub_for(xa.dtype), _sub_for(xb.dtype))
    sub_s = max(_sub_for(sa.dtype), _sub_for(sb.dtype))

    def plan(cap_rows):
        if rows_x >= rows_s:                       # larger pair drives the grid
            tx, g = _plan_tiles(rows_x, sub_x, cap_rows)
            ts, ns = _plan_tiles(rows_s, sub_s, cap_rows, grid=g)
            return tx, g, ts, ns, g
        ts, g = _plan_tiles(rows_s, sub_s, cap_rows)
        tx, nx = _plan_tiles(rows_x, sub_x, cap_rows, grid=g)
        return tx, nx, ts, g, g

    tile_x, n_x, tile_s, n_s, grid = plan(_MAX_BLOCK_ROWS)
    # If BOTH pairs stream multi-MiB blocks, halve the cap so the double-buffered
    # working set leaves headroom in v7x's 64 MiB VMEM.
    if tile_x + tile_s > 3 * _MAX_BLOCK_ROWS // 2:
        tile_x, n_x, tile_s, n_s, grid = plan(_MAX_BLOCK_ROWS // 2)

    mode_x = _mask_mode(rows_x, tile_x, n_x, grid)
    mode_s = _mask_mode(rows_s, tile_s, n_s, grid)
    kernel = functools.partial(_fused_pairs_kernel, rows_x=rows_x, rows_s=rows_s,
                               mode_x=mode_x, mode_s=mode_s)
    in_block_bytes = _LANES * (
        tile_x * (xa.dtype.itemsize + xb.dtype.itemsize)
        + tile_s * (sa.dtype.itemsize + sb.dtype.itemsize))

    abs_x, sq_x, abs_s, _sq_s = pl.pallas_call(
        kernel,
        out_shape=tuple(_out_shape(grid) for _ in range(4)),
        grid=(grid,),
        in_specs=[
            pl.BlockSpec((tile_x, _LANES), _block_index_map(n_x, grid)),
            pl.BlockSpec((tile_x, _LANES), _block_index_map(n_x, grid)),
            pl.BlockSpec((tile_s, _LANES), _block_index_map(n_s, grid)),
            pl.BlockSpec((tile_s, _LANES), _block_index_map(n_s, grid)),
        ],
        out_specs=tuple(_out_spec() for _ in range(4)),
        compiler_params=pltpu.CompilerParams(
            dimension_semantics=("parallel",),
            vmem_limit_bytes=_vmem_limit(in_block_bytes, tile_x + tile_s)),
    )(_lane_view(xa), _lane_view(xb), _lane_view(sa), _lane_view(sb))
    # _sq_s (MSE partials of the seq pair) is computed for kernel uniformity but unused.
    return jnp.sum(abs_x), jnp.sum(sq_x), jnp.sum(abs_s)


# --------------------------------------------------------------------------- #
# Loss
# --------------------------------------------------------------------------- #
@jax.jit
def _diffusion_losses(x_recon, noise, seq_orig, seq_gen):
    n_x = jnp.float32(noise.size)
    n_s = jnp.float32(seq_gen.size)
    ok_x = _pallas_eligible(noise, x_recon)
    ok_s = _pallas_eligible(seq_gen, seq_orig)

    if ok_x and ok_s:
        abs_x, sq_x, abs_s = _fused_pair_sums(noise, x_recon, seq_gen, seq_orig)
    else:
        if ok_x:
            abs_x, sq_x = _single_pair_sums(noise, x_recon)
        else:  # tiny / non-lane-dense: a fused jnp reduce beats a Pallas launch
            abs_x, sq_x = _jnp_pair_sums(noise, x_recon)
        if ok_s:
            abs_s, _ = _single_pair_sums(seq_gen, seq_orig)
        else:
            abs_s, _ = _jnp_pair_sums(seq_gen, seq_orig)

    loss = abs_x / n_x        # L1 over (noise, x_recon)  -- logged only
    l2_loss = sq_x / n_x      # MSE over (noise, x_recon)
    l_recon = abs_s / n_s     # L1 over (seq_gen, seq_orig)
    return l2_loss + l_recon, loss, l2_loss, l_recon


def diffusion_all_loss(x_recon, noise, seq_orig, seq_gen, logger=None, mode="eval"):
    """JAX/Pallas equivalent of DiffusionAllLoss.forward; returns L2 + L_recon."""
    total, loss, l2_loss, l_recon = _diffusion_losses(x_recon, noise, seq_orig, seq_gen)
    if logger is not None:
        # Pulling scalars to host forces a device sync (same as PyTorch .item());
        # only happens when a logger is actually supplied.
        loss_dic = {
            "Loss": float(loss),
            "L2_Loss": float(l2_loss),
            "Recon_Loss": float(l_recon),
        }
        logger.append(loss_dic)
        _ = {mode + "_" + k: v for k, v in loss_dic.items()}
        # TODO(synk): wandb.log(loss_dic) has no Pallas/JAX equivalent; do it host-side.
    return total


if __name__ == "__main__":
    key = jax.random.PRNGKey(0)
    k1, k2, k3, k4 = jax.random.split(key, 4)

    def ref_total(xr, nz, so, sg):
        return (jnp.mean((nz.astype(jnp.float32) - xr.astype(jnp.float32)) ** 2)
                + jnp.mean(jnp.abs(sg.astype(jnp.float32) - so.astype(jnp.float32))))

    # Module-typical shapes: image-like noise tensors (NCHW) + sequence tensors.
    x_recon = jax.random.normal(k1, (2, 4, 16, 16), dtype=jnp.float32)
    noise = jax.random.normal(k2, (2, 4, 16, 16), dtype=jnp.float32)
    seq_orig = jax.random.normal(k3, (2, 8, 32), dtype=jnp.float32)
    seq_gen = jax.random.normal(k4, (2, 8, 32), dtype=jnp.float32)

    logger = []
    out = diffusion_all_loss(x_recon, noise, seq_orig, seq_gen, logger, mode="eval")
    out = jax.block_until_ready(out)
    assert jnp.allclose(out, ref_total(x_recon, noise, seq_orig, seq_gen),
                        rtol=1e-5, atol=1e-6), out
    assert len(logger) == 1 and set(logger[0]) == {"Loss", "L2_Loss", "Recon_Loss"}

    # Multi-tile single-pair path (2304 rows -> 4 x 576-row tiles; seq pair -> jnp).
    xb = jax.random.normal(k1, (4, 8, 96, 96), dtype=jnp.float32)
    nb = jax.random.normal(k2, (4, 8, 96, 96), dtype=jnp.float32)
    out2 = jax.block_until_ready(_diffusion_losses(xb, nb, seq_orig, seq_gen)[0])
    assert jnp.allclose(out2, ref_total(xb, nb, seq_orig, seq_gen),
                        rtol=1e-5, atol=1e-6), out2

    # Fused two-pair launch (both pairs lane-dense and large enough).
    so3 = jax.random.normal(k3, (2, 64, 256), dtype=jnp.float32)
    sg3 = jax.random.normal(k4, (2, 64, 256), dtype=jnp.float32)
    out3 = jax.block_until_ready(_diffusion_losses(xb, nb, so3, sg3)[0])
    assert jnp.allclose(out3, ref_total(xb, nb, so3, sg3), rtol=1e-5, atol=1e-5), out3

    # Ragged driver (mask only on last grid step) + clamped always-masked follower.
    xr4 = jax.random.normal(k1, (1000, 128), dtype=jnp.float32)
    nz4 = jax.random.normal(k2, (1000, 128), dtype=jnp.float32)
    so4 = jax.random.normal(k3, (8, 128), dtype=jnp.float32)
    sg4 = jax.random.normal(k4, (8, 128), dtype=jnp.float32)
    out4 = jax.block_until_ready(_diffusion_losses(xr4, nz4, so4, sg4)[0])
    assert jnp.allclose(out4, ref_total(xr4, nz4, so4, sg4), rtol=1e-5, atol=1e-5), out4

    # bf16 inputs exercise the 16-row sublane rounding (fused path).
    xb16, nb16 = xb.astype(jnp.bfloat16), nb.astype(jnp.bfloat16)
    out5 = jax.block_until_ready(_diffusion_losses(xb16, nb16, so3, sg3)[0])
    assert jnp.allclose(out5, ref_total(xb16, nb16, so3, sg3), rtol=1e-4, atol=1e-4), out5

    print("KERNEL_OK")
</pallas_src>

<mosaic_0001>
module attributes {stable_mosaic.version = 11 : i64} {
  func.func @_single_pair_kernel(%arg0: i32, %arg1: memref<16x128xf32, #tpu.memory_space<vmem>>, %arg2: memref<16x128xf32, #tpu.memory_space<vmem>>, %arg3: memref<1x8x128xf32, #tpu.memory_space<vmem>>, %arg4: memref<1x8x128xf32, #tpu.memory_space<vmem>>) attributes {dimension_semantics = [#tpu.dimension_semantics<parallel>], iteration_bounds = array<i64: 1>, scalar_prefetch = 0 : i64, scratch_operands = 0 : i64, tpu.core_type = #tpu.core_type<tc>, window_params = [{transform_indices = @transform_0, window_bounds = array<i64: 16, 128>}, {transform_indices = @transform_1, window_bounds = array<i64: 16, 128>}, {transform_indices = @transform_2, window_bounds = array<i64: 1, 8, 128>}, {transform_indices = @transform_3, window_bounds = array<i64: 1, 8, 128>}]} {
    %c0 = arith.constant 0 : index
    %c0_0 = arith.constant 0 : index
    %0 = vector.load %arg1[%c0, %c0_0] : memref<16x128xf32, #tpu.memory_space<vmem>>, vector<16x128xf32>
    %c0_1 = arith.constant 0 : index
    %c0_2 = arith.constant 0 : index
    %1 = vector.load %arg2[%c0_1, %c0_2] : memref<16x128xf32, #tpu.memory_space<vmem>>, vector<16x128xf32>
    %2 = arith.subf %0, %1 : vector<16x128xf32>
    %3 = vector.shape_cast %2 : vector<16x128xf32> to vector<2x8x128xf32>
    %4 = math.absf %3 : vector<2x8x128xf32>
    %cst = arith.constant dense<0.000000e+00> : vector<8x128xf32>
    %5 = vector.multi_reduction <add>, %4, %cst [0] : vector<2x8x128xf32> to vector<8x128xf32>
    %c0_3 = arith.constant 0 : index
    %c0_4 = arith.constant 0 : index
    %c0_5 = arith.constant 0 : index
    %6 = vector.load %arg3[%c0_3, %c0_4, %c0_5] : memref<1x8x128xf32, #tpu.memory_space<vmem>>, vector<1x8x128xf32>
    %7 = vector.shape_cast %6 : vector<1x8x128xf32> to vector<8x128xf32>
    %8 = vector.shape_cast %5 : vector<8x128xf32> to vector<1x8x128xf32>
    tpu.vector_store %arg3[%c0_3, %c0_4, %c0_5], %8 {strides = array<i32>} : memref<1x8x128xf32, #tpu.memory_space<vmem>>, vector<1x8x128xf32>,
    %9 = arith.mulf %3, %3 : vector<2x8x128xf32>
    %cst_6 = arith.constant dense<0.000000e+00> : vector<8x128xf32>
    %10 = vector.multi_reduction <add>, %9, %cst_6 [0] : vector<2x8x128xf32> to vector<8x128xf32>
    %c0_7 = arith.constant 0 : index
    %c0_8 = arith.constant 0 : index
    %c0_9 = arith.constant 0 : index
    %11 = vector.load %arg4[%c0_7, %c0_8, %c0_9] : memref<1x8x128xf32, #tpu.memory_space<vmem>>, vector<1x8x128xf32>
    %12 = vector.shape_cast %11 : vector<1x8x128xf32> to vector<8x128xf32>
    %13 = vector.shape_cast %10 : vector<8x128xf32> to vector<1x8x128xf32>
    tpu.vector_store %arg4[%c0_7, %c0_8, %c0_9], %13 {strides = array<i32>} : memref<1x8x128xf32, #tpu.memory_space<vmem>>, vector<1x8x128xf32>,
    return
  }
  func.func @transform_0(%arg0: i32) -> (i32, i32) {
    %c0_i32 = arith.constant 0 : i32
    %c0_i32_0 = arith.constant 0 : i32
    return %arg0, %c0_i32 : i32, i32
  }
  func.func @transform_1(%arg0: i32) -> (i32, i32) {
    %c0_i32 = arith.constant 0 : i32
    %c0_i32_0 = arith.constant 0 : i32
    return %arg0, %c0_i32 : i32, i32
  }
  func.func @transform_2(%arg0: i32) -> (i32, i32, i32) {
    %c0_i32 = arith.constant 0 : i32
    %c0_i32_0 = arith.constant 0 : i32
    %c0_i32_1 = arith.constant 0 : i32
    return %arg0, %c0_i32, %c0_i32_0 : i32, i32, i32
  }
  func.func @transform_3(%arg0: i32) -> (i32, i32, i32) {
    %c0_i32 = arith.constant 0 : i32
    %c0_i32_0 = arith.constant 0 : i32
    %c0_i32_1 = arith.constant 0 : i32
    return %arg0, %c0_i32, %c0_i32_0 : i32, i32, i32
  }
}

</mosaic_0001>

<llo_original>
// kernel: _diffusion_losses.1
$region0: #{_diffusion_losses.1}
  #allocation0 [shape = 'u32[]', space=smem, size = 0x4, offset = 0x4, fixed_abs, tag = 'smem constant byte address 0x4 - core index']
  #allocation1 [shape = 'u32[72,128]{1,0:T(1,128)}', space=vmem, size = 0x9000, scoped, tag = 'internal scratch']
  %s0 = inlined_call_operand.vmem [shape: f32[16,128], index: 0, kind: input, shape index: {}]
  %s1 = inlined_call_operand.vmem [shape: f32[16,128], index: 1, kind: input, shape index: {}]
  %s2 = inlined_call_operand.vmem [shape: f32[1,8,128], index: 2, kind: output, shape index: {0}]
  %s3 = inlined_call_operand.vmem [shape: f32[1,8,128], index: 3, kind: output, shape index: {1}]
  %4 = xla_tuple %s2, %s3
  %s5 = sld [smem:[#allocation0]]
  $region26: #{_diffusion_losses.1} parent=0
    _
  %s7 = ssub.s32 1, %s5
  %s8 = scalar_select 0, %s7, %s5
  // Predicated region
  $region2: #{_diffusion_losses.1} parent=0 // pred_check
    _
  $region3: #{_diffusion_losses.1} parent=0 // pred_check_branch
    %10 = sbr.rel (0) target = $region5
  $region4: #{_diffusion_losses.1} parent=0 // pred_region
    _
  $region5: #{_diffusion_losses.1} parent=0 // pred_fallthru
    _
  // Predicated region
  $region6: #{_diffusion_losses.1} parent=0 // pred_check
    _
  $region7: #{_diffusion_losses.1} parent=0 // pred_check_branch
    %12 = sbr.rel (0) target = $region9
  $region8: #{_diffusion_losses.1} parent=0 // pred_region
    _
  $region9: #{_diffusion_losses.1} parent=0 // pred_fallthru
    _
  %v13 = vld [vmem:[%s0] sm:$0xff]
  %v14 = vld [vmem:[%s0 + $0x8] sm:$0xff]
  %v15 = vld [vmem:[%s1] sm:$0xff]
  %v16 = vld [vmem:[%s1 + $0x8] sm:$0xff]
  %v17 = vsub.f32 %v13, %v15
  %v18 = vsub.f32 %v14, %v16
  %v19 = vand.u32 2147483647, %v17
  %v20 = vand.u32 2147483647, %v18
  %v21 = vadd.f32 %v19, %v20
  %22 = vst [vmem:[%s2] sm:$0xff] %v21
  %v23 = vmul.f32 %v17, %v17
  %v24 = vmul.f32 %v18, %v18
  %v25 = vadd.f32 %v23, %v24
  %26 = vst [vmem:[%s3] sm:$0xff] %v25
  // Predicated region
  $region10: #{_diffusion_losses.1} parent=0 // pred_check
    _
  $region11: #{_diffusion_losses.1} parent=0 // pred_check_branch
    %28 = sbr.rel (0) target = $region13
  $region12: #{_diffusion_losses.1} parent=0 // pred_region
    _
  $region13: #{_diffusion_losses.1} parent=0 // pred_fallthru
    _
  // Predicated region
  $region14: #{_diffusion_losses.1} parent=0 // pred_check
    _
  $region15: #{_diffusion_losses.1} parent=0 // pred_check_branch
    %30 = sbr.rel (0) target = $region17
  $region16: #{_diffusion_losses.1} parent=0 // pred_region
    _
  $region17: #{_diffusion_losses.1} parent=0 // pred_fallthru
    _
  // Predicated region
  $region18: #{_diffusion_losses.1} parent=0 // pred_check
    _
  $region19: #{_diffusion_losses.1} parent=0 // pred_check_branch
    %32 = sbr.rel (0) target = $region21
  $region20: #{_diffusion_losses.1} parent=0 // pred_region
    _
  $region21: #{_diffusion_losses.1} parent=0 // pred_fallthru
    _
  // Predicated region
  $region22: #{_diffusion_losses.1} parent=0 // pred_check
    _
  $region23: #{_diffusion_losses.1} parent=0 // pred_check_branch
    %34 = sbr.rel (0) target = $region25
  $region24: #{_diffusion_losses.1} parent=0 // pred_region
    _
  $region25: #{_diffusion_losses.1} parent=0 // pred_fallthru
    _

</llo_original>
